<compile_context>
chip_gen: v7x
topology: tpu7x:2x2x1
jax: 0.10.0
libtpu: 0.0.40
codegen_flags: <defaults>
</compile_context>

<pallas_src>
import jax
import jax.numpy as jnp
from jax.experimental import pallas as pl
from jax.experimental.pallas import tpu as pltpu


PATCH_SIZE = 128  # logical patch_size of reconstruct_matrix (semantic only:
                  # identity forward => tile decomposition does not affect results)


def _round_up(x: int, m: int) -> int:
    return ((x + m - 1) // m) * m


def _recon_kernel(x_ref, o_ref):
    """One grid step == one lane-dense tile of the low-res matrix.

    Fuses predict_patch (abstract forward -> identity) with the
    reconstruct_matrix post-processing (clip to [0,1], threshold < 1e-3).
    """
    # --- model forward on the tile (abstract -> identity stand-in) ---
    pred = x_ref[...].astype(jnp.float32)

    # --- reconstruct_matrix post-processing ---
    # np.clip(x, 0, 1) followed by x[x < 0.001] = 0:
    # negatives are zeroed by the threshold, so max(pred, 0) is redundant.
    clipped = jnp.minimum(pred, 1.0)
    o_ref[...] = jnp.where(clipped < 0.001, 0.0, clipped).astype(o_ref.dtype)


def _tile_byte_budget() -> int:
    """Per-block byte budget, tuned per TPU generation."""
    try:
        kind = jax.devices()[0].device_kind.lower()
    except Exception:  # pragma: no cover - e.g. no devices during tracing
        kind = ""
    if "v7" in kind:
        # v7x: ~3.2 TB/s HBM -> a 2 MiB tile's load+store is ~1.25 us and the
        # ~0.35 us per-step overhead is a ~25% tax; 4 MiB tiles cut it to ~10%.
        return 4 * 1024 * 1024
    # v5e / v6e: 2 MiB blocks already sit at ~85%+ of the HBM roofline and the
    # double-buffered in+out footprint (8 MiB) fits v5e's 16 MiB scoped VMEM.
    return 2 * 1024 * 1024


def _choose_block(h: int, w: int, itemsize: int, budget: int) -> tuple[int, int]:
    """Pick a lane-dense (bm, bn) block of roughly `budget` bytes."""
    h8 = _round_up(h, 8)
    w128 = _round_up(w, 128)

    # Lane axis: cover the whole row when an 8-row full-width tile fits the
    # budget (contiguous HBM DMA, 1-D grid over rows); otherwise take the
    # widest multiple of 128 that keeps an 8-row tile within budget.
    if w128 * 8 * itemsize <= budget:
        bn = w128
    else:
        bn = max(128, (budget // (8 * itemsize)) // 128 * 128)
        bn = min(bn, w128)

    # Sublane axis: as many rows as the budget allows.
    bm = max(8, (budget // (bn * itemsize)) // 8 * 8)
    bm = min(bm, h8)

    # Megacore guard: never let the grid degenerate to a single block when the
    # rows can be split — keep >= 2 blocks along the "parallel" row axis so
    # v7x's 2 TensorCores (and the DMA engines) both stream.
    if bm >= h8 and pl.cdiv(w128, bn) == 1 and h8 > 8:
        bm = max(8, _round_up(h8 // 2, 8))

    return bm, bn


def reconstruct_matrix(lr: jax.Array, patch_size: int = PATCH_SIZE) -> jax.Array:
    """Pallas equivalent of BaseModel.reconstruct_matrix for a 2D matrix."""
    assert lr.ndim == 2, "reconstruct_matrix expects a 2D low-res matrix"
    h, w = lr.shape

    # Output dtype follows the input dtype (cast happens inside the kernel);
    # non-float inputs fall back to f32.
    out_dtype = lr.dtype if jnp.issubdtype(lr.dtype, jnp.floating) else jnp.float32

    in_itemsize = jnp.dtype(lr.dtype).itemsize
    out_itemsize = jnp.dtype(out_dtype).itemsize
    budget = _tile_byte_budget()
    bm, bn = _choose_block(h, w, max(in_itemsize, out_itemsize), budget)

    grid_rows = pl.cdiv(h, bm)
    grid_cols = pl.cdiv(w, bn)

    if grid_cols == 1:
        # Full-width blocks: contiguous DMA per block, 1-D grid over rows.
        grid = (grid_rows,)
        index_map = lambda i: (i, 0)
        dim_semantics = ("parallel",)
    else:
        grid = (grid_rows, grid_cols)
        index_map = lambda i, j: (i, j)
        dim_semantics = ("parallel", "parallel")

    # Double-buffered in + out footprint, plus headroom; well under every
    # generation's physical VMEM (v7x: 64 MiB).
    block_bytes = bm * bn
    vmem_needed = 2 * block_bytes * (in_itemsize + out_itemsize)
    vmem_limit = min(vmem_needed + (4 << 20), 48 << 20)

    cost = pl.CostEstimate(
        flops=3 * h * w,              # min + cmp + select per element
        transcendentals=0,
        bytes_accessed=h * w * (in_itemsize + out_itemsize),
    )

    return pl.pallas_call(
        _recon_kernel,
        out_shape=jax.ShapeDtypeStruct((h, w), out_dtype),
        grid_spec=pltpu.PrefetchScalarGridSpec(
            num_scalar_prefetch=0,
            grid=grid,
            in_specs=[pl.BlockSpec((bm, bn), index_map)],
            out_specs=pl.BlockSpec((bm, bn), index_map),
        ),
        compiler_params=pltpu.CompilerParams(
            dimension_semantics=dim_semantics,
            vmem_limit_bytes=vmem_limit,
        ),
        cost_estimate=cost,
    )(lr)


def _reference(lr):
    """Pure-JAX reference of the same pipeline (identity forward)."""
    x = jnp.clip(lr.astype(jnp.float32), 0.0, 1.0)
    return jnp.where(x < 0.001, 0.0, x)


if __name__ == "__main__":
    key = jax.random.PRNGKey(0)
    # Small, non-multiple-of-tile-size low-res matrix so the partial-tile
    # (masked store) path and the megacore row-split are exercised.
    # Values span <0 / >1 / <1e-3.
    H, W = 130, 200
    lr = jax.random.uniform(key, (H, W), dtype=jnp.float32,
                            minval=-0.5, maxval=1.5)

    out = reconstruct_matrix(lr, patch_size=PATCH_SIZE)
    out = jax.block_until_ready(out)

    ref = _reference(lr)
    assert out.shape == (H, W), out.shape
    assert out.dtype == lr.dtype, out.dtype
    assert jnp.allclose(out, ref, atol=1e-6), "mismatch vs f32 reference"

    # bf16 input: output dtype follows input dtype (halves write-back traffic).
    lr_bf16 = lr.astype(jnp.bfloat16)
    out_bf16 = jax.block_until_ready(reconstruct_matrix(lr_bf16))
    ref_bf16 = _reference(lr_bf16)
    assert out_bf16.dtype == jnp.bfloat16, out_bf16.dtype
    assert jnp.allclose(out_bf16.astype(jnp.float32), ref_bf16, atol=1e-2), \
        "mismatch vs bf16 reference"

    print("KERNEL_OK")
</pallas_src>

<mosaic_0001>
module attributes {stable_mosaic.version = 11 : i64} {
  func.func @_recon_kernel(%arg0: i32, %arg1: memref<72x256xf32, #tpu.memory_space<vmem>>, %arg2: memref<72x256xf32, #tpu.memory_space<vmem>>) attributes {dimension_semantics = [#tpu.dimension_semantics<parallel>], iteration_bounds = array<i64: 2>, scalar_prefetch = 0 : i64, scratch_operands = 0 : i64, tpu.core_type = #tpu.core_type<tc>, window_params = [{transform_indices = @transform_0, window_bounds = array<i64: 72, 256>}, {transform_indices = @transform_1, window_bounds = array<i64: 72, 256>}]} {
    %c0 = arith.constant 0 : index
    %c0_0 = arith.constant 0 : index
    %0 = vector.load %arg1[%c0, %c0_0] : memref<72x256xf32, #tpu.memory_space<vmem>>, vector<72x256xf32>
    %cst = arith.constant 1.000000e+00 : f32
    %1 = vector.broadcast %cst : f32 to vector<72x256xf32>
    %2 = arith.minimumf %0, %1 : vector<72x256xf32>
    %cst_1 = arith.constant 1.000000e-03 : f32
    %3 = vector.broadcast %cst_1 : f32 to vector<72x256xf32>
    %4 = arith.cmpf olt, %2, %3 : vector<72x256xf32>
    %cst_2 = arith.constant 0.000000e+00 : f32
    %5 = vector.broadcast %cst_2 : f32 to vector<72x256xf32>
    %6 = arith.select %4, %5, %2 : vector<72x256xi1>, vector<72x256xf32>
    %c0_3 = arith.constant 0 : index
    %c0_4 = arith.constant 0 : index
    %7 = vector.load %arg2[%c0_3, %c0_4] : memref<72x256xf32, #tpu.memory_space<vmem>>, vector<72x256xf32>
    tpu.vector_store %arg2[%c0_3, %c0_4], %6 {strides = array<i32>} : memref<72x256xf32, #tpu.memory_space<vmem>>, vector<72x256xf32>,
    return
  }
  func.func @transform_0(%arg0: i32) -> (i32, i32) {
    %c0_i32 = arith.constant 0 : i32
    %c0_i32_0 = arith.constant 0 : i32
    return %arg0, %c0_i32 : i32, i32
  }
  func.func @transform_1(%arg0: i32) -> (i32, i32) {
    %c0_i32 = arith.constant 0 : i32
    %c0_i32_0 = arith.constant 0 : i32
    return %arg0, %c0_i32 : i32, i32
  }
}

</mosaic_0001>

<llo_original>
// kernel: tpu_custom_call.1
$region0: #{tpu_custom_call.1}
  #allocation0 [shape = 'u32[]', space=smem, size = 0x4, offset = 0x4, fixed_abs, tag = 'smem constant byte address 0x4 - core index']
  #allocation1 [shape = 'u32[144,128]{1,0:T(1,128)}', space=vmem, size = 0x12000, scoped, tag = 'internal scratch']
  %s0 = inlined_call_operand.hbm [shape: f32[130,200], index: 0, kind: input, shape index: {}]
  %s1 = inlined_call_operand.hbm [shape: f32[130,200], index: 1, kind: output, shape index: {}]
  %s2 = sld [smem:[#allocation0]]
  $region41: #{tpu_custom_call.1} parent=0
    _
  %s4 = ssub.s32 1, %s2
  %s5 = scalar_select 0, %s4, %s2
  $region1: #{tpu_custom_call.1} parent=0
    #allocation2 [shape = 'u8[147456]{0}', space=vmem, size = 0x24000, scoped, tag = 'input window, operand 0']
    #allocation3 [shape = 's32[2]{0}', space=sflag, size = 0x8, scoped, tag = 'scoped memory for tpu_custom_call.1']
    #allocation4 [shape = 's32[2]{0}', space=sflag, size = 0x8, scoped, tag = 'scoped memory for tpu_custom_call.1']
    #allocation5 [shape = 'u8[147456]{0}', space=vmem, size = 0x24000, scoped, tag = 'output window, operand 0']
    %6 = vsyncpa [#allocation3], 0
    %s7 = scalar_lea.sflag [#allocation3], 1
    %8 = vsyncpa %s7, 0
    %9 = vsyncpa [#allocation4], 0
    %s10 = scalar_lea.sflag [#allocation4], 1
    %11 = vsyncpa %s10, 0
    loop: start=0, step=1, limit=4
    $region2: #{tpu_custom_call.1} parent=1 // loop_pre_header
      _
    $region3: #{tpu_custom_call.1} parent=1 // loop_header
      %s13 = sphi 0, %s17
      %p14 = scmp.ge.s32.totalorder %s13, 4
      %s23 = sphi 0, %s25
      %s26 = sphi 0, %s23
      %s27 = sphi 0, %s26
      %s43 = sphi 0, %s27
      %s49 = sphi 0, %s51
      %s52 = sphi 0, %s49
      %s53 = sphi 0, %s52
      %s69 = sphi 0, %s53
    $region4: #{tpu_custom_call.1} parent=1 // loop_header_branch
      %16 = sbr.rel (%p14) target = $region8
    $region5: #{tpu_custom_call.1} parent=1 // loop_body
      %s18 = ssub.s32 %s13, 1
      %s19 = ssub.s32 %s13, 2
      %s20 = sadd.s32 %s13, 1
      %s21 = ssub.s32 %s13, %s20
      %p22 = scmp.eq.s32.totalorder %s21, 0
      %s24 = sadd.s32 %s23, 1
      %s25 = scalar_select %p22, %s23, %s24
      %p28 = pneg %p22
      %p29 = scmp.eq.s32.totalorder %s13, 1
      %p30 = por %p28, %p29
      %p31 = scmp.ne.s32.totalorder %s23, %s26
      %p32 = scmp.eq.s32.totalorder %s13, 0
      %p33 = por %p31, %p32
      %p34 = scmp.ne.s32.totalorder %s23, %s26
      %p35 = scmp.eq.s32.totalorder %s18, 1
      %p36 = por %p34, %p35
      %p37 = scmp.ne.s32.totalorder %s26, %s27
      %p38 = scmp.eq.s32.totalorder %s18, 0
      %p39 = por %p37, %p38
      %p40 = scmp.ne.s32.totalorder %s26, %s27
      %p41 = scmp.eq.s32.totalorder %s19, 1
      %p42 = por %p40, %p41
      %p44 = scmp.ne.s32.totalorder %s27, %s43
      %p45 = scmp.eq.s32.totalorder %s19, 0
      %p46 = por %p44, %p45
      %s47 = ssub.s32 %s13, %s20
      %p48 = scmp.eq.s32.totalorder %s47, 0
      %s50 = sadd.s32 %s49, 1
      %s51 = scalar_select %p48, %s49, %s50
      %p54 = pneg %p48
      %p55 = scmp.eq.s32.totalorder %s13, 1
      %p56 = por %p54, %p55
      %p57 = scmp.ne.s32.totalorder %s49, %s52
      %p58 = scmp.eq.s32.totalorder %s13, 0
      %p59 = por %p57, %p58
      %p60 = scmp.ne.s32.totalorder %s49, %s52
      %p61 = scmp.eq.s32.totalorder %s18, 1
      %p62 = por %p60, %p61
      %p63 = scmp.ne.s32.totalorder %s52, %s53
      %p64 = scmp.eq.s32.totalorder %s18, 0
      %p65 = por %p63, %p64
      %p66 = scmp.ne.s32.totalorder %s52, %s53
      %p67 = scmp.eq.s32.totalorder %s19, 1
      %p68 = por %p66, %p67
      %p70 = scmp.ne.s32.totalorder %s53, %s69
      %p71 = scmp.eq.s32.totalorder %s19, 0
      %p72 = por %p70, %p71
      %p73 = scmp.le.s32.totalorder 1, %s13
      %p74 = scmp.lt.s32.totalorder %s13, 3
      %p75 = pnand %p73, %p74
      %p76 = pneg %p75
      // Predicated region
      $region9: #{tpu_custom_call.1} parent=5 // pred_check
        _
      $region10: #{tpu_custom_call.1} parent=5 // pred_check_branch
        %78 = sbr.rel (%p75) target = $region12
      $region11: #{tpu_custom_call.1} parent=5 // pred_region
        %s79 = ssub.s32 %s13, 1
      $region12: #{tpu_custom_call.1} parent=5 // pred_fallthru
        _
      %p80 = scmp.lt.s32.totalorder %s13, 2
      // Predicated region
      $region13: #{tpu_custom_call.1} parent=5 // pred_check
        %p81 = pneg %p80
      $region14: #{tpu_custom_call.1} parent=5 // pred_check_branch
        %83 = sbr.rel (%p81) target = $region16
      $region15: #{tpu_custom_call.1} parent=5 // pred_region
        // Predicated region
        $region17: #{tpu_custom_call.1} parent=15 // pred_check
          %p84 = pneg %p33
        $region18: #{tpu_custom_call.1} parent=15 // pred_check_branch
          %86 = sbr.rel (%p84) target = $region20
        $region19: #{tpu_custom_call.1} parent=15 // pred_region
          %s87 = sand.u32 %s23, 1
          %s88 = scalar_lea.sflag [#allocation3], %s87
          %s89 = sand.u32 %s23, 1
          %s90 = smul.addr %s89, 144
          %s91 = scalar_lea.vmem [#allocation2], %s90
          %s92 = smul.u32 9, %s13
          %s93 = ssub.s32 17, %s92
          %p94 = scmp.lt.s32.totalorder %s93, 9
          %s95 = scalar_select %p94, %s93, 9
          %s96 = smul.u32 128, %s95
          %s97 = smul.u32 %s96, 2
          %s99 = ssub.s32 2304, %s97
          %100 = vsyncadd %s88, %s99
          %p101 = scmp.ne.s32.totalorder 0, %s97
          %s102 = smul.addr %s92, 2
          %s103 = smul.addr %s102, 128
          %s104 = scalar_lea.hbm %s0, %s103
          %s105 = smul.u32 16, %s95
          %s106 = sshll.u32 %s91, 4
          %s107 = int_to_ptr.vmem [resolvable:$true] %s106
          %s108 = sshll.u32 %s105, 4
          %112 = dma.hbm_to_vmem [thread:$0]  (%p101), %s104, %s108, %s107, %s88, 256, 256, 16
        $region20: #{tpu_custom_call.1} parent=15 // pred_fallthru
          _
      $region16: #{tpu_custom_call.1} parent=5 // pred_fallthru
        _
      %p113 = scmp.le.s32.totalorder 1, %s13
      %p114 = scmp.lt.s32.totalorder %s13, 3
      %p115 = pnand %p113, %p114
      %p116 = pneg %p115
      // Predicated region
      $region21: #{tpu_custom_call.1} parent=5 // pred_check
        _
      $region22: #{tpu_custom_call.1} parent=5 // pred_check_branch
        %118 = sbr.rel (%p115) target = $region24
      $region23: #{tpu_custom_call.1} parent=5 // pred_region
        %s119 = ssub.s32 %s13, 1
        %s120 = sand.u32 %s26, 1
        %s121 = scalar_lea.sflag [#allocation3], %s120
        %s122 = sand.u32 %s26, 1
        %s123 = smul.addr %s122, 144
        %s124 = scalar_lea.vmem [#allocation2], %s123
        // Predicated region
        $region25: #{tpu_custom_call.1} parent=23 // pred_check
          %p125 = pneg %p39
        $region26: #{tpu_custom_call.1} parent=23 // pred_check_branch
          %127 = sbr.rel (%p125) target = $region28
        $region27: #{tpu_custom_call.1} parent=23 // pred_region
          %128 = dma.done %s121, 2304
        $region28: #{tpu_custom_call.1} parent=23 // pred_fallthru
          _
        %s129 = sand.u32 %s26, 1
        %s130 = scalar_lea.sflag [#allocation3], %s129
        %s131 = sand.u32 %s26, 1
        %s132 = smul.addr %s131, 144
        %s133 = scalar_lea.vmem [#allocation2], %s132
        %p134 = pneg %p39
        %p135 = pneg %p36
        %p136 = pneg %p65
        %p137 = pneg %p62
        %s138 = sand.u32 %s52, 1
        %s139 = scalar_lea.sflag [#allocation4], %s138
        %s140 = sand.u32 %s52, 1
        %s141 = smul.addr %s140, 144
        %s142 = scalar_lea.vmem [#allocation5], %s141
        %s143 = smul.u32 9, %s18
        %s144 = ssub.s32 17, %s143
        %p145 = scmp.lt.s32.totalorder %s144, 9
        %s146 = scalar_select %p145, %s144, 9
        %s147 = smul.u32 128, %s146
        %s148 = smul.u32 %s147, 2
        %s149 = smul.u32 9, %s18
        %s150 = ssub.s32 17, %s149
        %p151 = scmp.lt.s32.totalorder %s150, 9
        %s152 = scalar_select %p151, %s150, 9
        %s153 = smul.u32 128, %s152
        %s154 = smul.u32 %s153, 2
        %v155 = vld [vmem:[%s124] sm:$0xff]
        %v156 = vld [vmem:[%s124 + $0x8] sm:$0xff]
        %v157 = vld [vmem:[%s124 + $0x10] sm:$0xff]
        %v158 = vld [vmem:[%s124 + $0x18] sm:$0xff]
        %v159 = vld [vmem:[%s124 + $0x20] sm:$0xff]
        %v160 = vld [vmem:[%s124 + $0x28] sm:$0xff]
        %v161 = vld [vmem:[%s124 + $0x30] sm:$0xff]
        %v162 = vld [vmem:[%s124 + $0x38] sm:$0xff]
        %v163 = vld [vmem:[%s124 + $0x40] sm:$0xff]
        %v164 = vld [vmem:[%s124 + $0x48] sm:$0xff]
        %v165 = vld [vmem:[%s124 + $0x50] sm:$0xff]
        %v166 = vld [vmem:[%s124 + $0x58] sm:$0xff]
        %v167 = vld [vmem:[%s124 + $0x60] sm:$0xff]
        %v168 = vld [vmem:[%s124 + $0x68] sm:$0xff]
        %v169 = vld [vmem:[%s124 + $0x70] sm:$0xff]
        %v170 = vld [vmem:[%s124 + $0x78] sm:$0xff]
        %v171 = vld [vmem:[%s124 + $0x80] sm:$0xff]
        %v172 = vld [vmem:[%s124 + $0x88] sm:$0xff]
        %v173 = vmin.f32 %v155, 1.0
        %v174 = vmin.f32 %v156, 1.0
        %v175 = vmin.f32 %v157, 1.0
        %v176 = vmin.f32 %v158, 1.0
        %v177 = vmin.f32 %v159, 1.0
        %v178 = vmin.f32 %v160, 1.0
        %v179 = vmin.f32 %v161, 1.0
        %v180 = vmin.f32 %v162, 1.0
        %v181 = vmin.f32 %v163, 1.0
        %v182 = vmin.f32 %v164, 1.0
        %v183 = vmin.f32 %v165, 1.0
        %v184 = vmin.f32 %v166, 1.0
        %v185 = vmin.f32 %v167, 1.0
        %v186 = vmin.f32 %v168, 1.0
        %v187 = vmin.f32 %v169, 1.0
        %v188 = vmin.f32 %v170, 1.0
        %v189 = vmin.f32 %v171, 1.0
        %v190 = vmin.f32 %v172, 1.0
        %vm191 = vcmp.lt.f32.partialorder %v173, 0.001
        %vm192 = vcmp.lt.f32.partialorder %v174, 0.001
        %vm193 = vcmp.lt.f32.partialorder %v175, 0.001
        %vm194 = vcmp.lt.f32.partialorder %v176, 0.001
        %vm195 = vcmp.lt.f32.partialorder %v177, 0.001
        %vm196 = vcmp.lt.f32.partialorder %v178, 0.001
        %vm197 = vcmp.lt.f32.partialorder %v179, 0.001
        %vm198 = vcmp.lt.f32.partialorder %v180, 0.001
        %vm199 = vcmp.lt.f32.partialorder %v181, 0.001
        %vm200 = vcmp.lt.f32.partialorder %v182, 0.001
        %vm201 = vcmp.lt.f32.partialorder %v183, 0.001
        %vm202 = vcmp.lt.f32.partialorder %v184, 0.001
        %vm203 = vcmp.lt.f32.partialorder %v185, 0.001
        %vm204 = vcmp.lt.f32.partialorder %v186, 0.001
        %vm205 = vcmp.lt.f32.partialorder %v187, 0.001
        %vm206 = vcmp.lt.f32.partialorder %v188, 0.001
        %vm207 = vcmp.lt.f32.partialorder %v189, 0.001
        %vm208 = vcmp.lt.f32.partialorder %v190, 0.001
        %v209 = vsel %vm191, 0.0, %v173
        %v210 = vsel %vm192, 0.0, %v174
        %v211 = vsel %vm193, 0.0, %v175
        %v212 = vsel %vm194, 0.0, %v176
        %v213 = vsel %vm195, 0.0, %v177
        %v214 = vsel %vm196, 0.0, %v178
        %v215 = vsel %vm197, 0.0, %v179
        %v216 = vsel %vm198, 0.0, %v180
        %v217 = vsel %vm199, 0.0, %v181
        %v218 = vsel %vm200, 0.0, %v182
        %v219 = vsel %vm201, 0.0, %v183
        %v220 = vsel %vm202, 0.0, %v184
        %v221 = vsel %vm203, 0.0, %v185
        %v222 = vsel %vm204, 0.0, %v186
        %v223 = vsel %vm205, 0.0, %v187
        %v224 = vsel %vm206, 0.0, %v188
        %v225 = vsel %vm207, 0.0, %v189
        %v226 = vsel %vm208, 0.0, %v190
        %227 = vst [vmem:[%s142] sm:$0xff] %v209
        %228 = vst [vmem:[%s142 + $0x8] sm:$0xff] %v210
        %229 = vst [vmem:[%s142 + $0x10] sm:$0xff] %v211
        %230 = vst [vmem:[%s142 + $0x18] sm:$0xff] %v212
        %231 = vst [vmem:[%s142 + $0x20] sm:$0xff] %v213
        %232 = vst [vmem:[%s142 + $0x28] sm:$0xff] %v214
        %233 = vst [vmem:[%s142 + $0x30] sm:$0xff] %v215
        %234 = vst [vmem:[%s142 + $0x38] sm:$0xff] %v216
        %235 = vst [vmem:[%s142 + $0x40] sm:$0xff] %v217
        %236 = vst [vmem:[%s142 + $0x48] sm:$0xff] %v218
        %237 = vst [vmem:[%s142 + $0x50] sm:$0xff] %v219
        %238 = vst [vmem:[%s142 + $0x58] sm:$0xff] %v220
        %239 = vst [vmem:[%s142 + $0x60] sm:$0xff] %v221
        %240 = vst [vmem:[%s142 + $0x68] sm:$0xff] %v222
        %241 = vst [vmem:[%s142 + $0x70] sm:$0xff] %v223
        %242 = vst [vmem:[%s142 + $0x78] sm:$0xff] %v224
        %243 = vst [vmem:[%s142 + $0x80] sm:$0xff] %v225
        %244 = vst [vmem:[%s142 + $0x88] sm:$0xff] %v226
        %s245 = sand.u32 %s52, 1
        %s246 = scalar_lea.sflag [#allocation4], %s245
        %s247 = sand.u32 %s52, 1
        %s248 = smul.addr %s247, 144
        %s249 = scalar_lea.vmem [#allocation5], %s248
        // Predicated region
        $region29: #{tpu_custom_call.1} parent=23 // pred_check
          %p250 = pneg %p62
        $region30: #{tpu_custom_call.1} parent=23 // pred_check_branch
          %252 = sbr.rel (%p250) target = $region32
        $region31: #{tpu_custom_call.1} parent=23 // pred_region
          %s253 = smul.u32 9, %s18
          %s254 = ssub.s32 17, %s253
          %p255 = scmp.lt.s32.totalorder %s254, 9
          %s256 = scalar_select %p255, %s254, 9
          %s257 = smul.u32 128, %s256
          %s258 = smul.u32 %s257, 2
          %s260 = ssub.s32 2304, %s258
          %261 = vsyncadd %s246, %s260
          %p262 = scmp.ne.s32.totalorder 0, %s258
          %s263 = smul.addr %s253, 2
          %s264 = smul.addr %s263, 128
          %s265 = scalar_lea.hbm %s1, %s264
          %s266 = smul.u32 16, %s256
          %s267 = sshll.u32 %s249, 4
          %s268 = int_to_ptr.vmem [resolvable:$true] %s267
          %s269 = sshll.u32 %s266, 4
          %273 = dma.vmem_to_hbm [thread:$0]  (%p262), %s268, %s269, %s265, %s246, 256, 256, 16
        $region32: #{tpu_custom_call.1} parent=23 // pred_fallthru
          _
      $region24: #{tpu_custom_call.1} parent=5 // pred_fallthru
        _
      %p274 = scmp.le.s32.totalorder 2, %s13
      // Predicated region
      $region33: #{tpu_custom_call.1} parent=5 // pred_check
        %p275 = pneg %p274
      $region34: #{tpu_custom_call.1} parent=5 // pred_check_branch
        %277 = sbr.rel (%p275) target = $region36
      $region35: #{tpu_custom_call.1} parent=5 // pred_region
        %s278 = ssub.s32 %s13, 2
        // Predicated region
        $region37: #{tpu_custom_call.1} parent=35 // pred_check
          %p279 = pneg %p68
        $region38: #{tpu_custom_call.1} parent=35 // pred_check_branch
          %281 = sbr.rel (%p279) target = $region40
        $region39: #{tpu_custom_call.1} parent=35 // pred_region
          %s282 = sand.u32 %s53, 1
          %s283 = scalar_lea.sflag [#allocation4], %s282
          %s284 = sand.u32 %s53, 1
          %s285 = smul.addr %s284, 144
          %s286 = scalar_lea.vmem [#allocation5], %s285
          %287 = dma.done %s283, 2304
        $region40: #{tpu_custom_call.1} parent=35 // pred_fallthru
          _
      $region36: #{tpu_custom_call.1} parent=5 // pred_fallthru
        _
    $region6: #{tpu_custom_call.1} parent=1 // loop_footer
      %s17 = sadd.s32 1, %s13
    $region7: #{tpu_custom_call.1} parent=1 // loop_footer_branch
      %12 = sbr.rel target = $region3
    $region8: #{tpu_custom_call.1} parent=1 // loop_exit
      _
    %288 = vsyncpa [#allocation3], 1
    %s289 = scalar_lea.sflag [#allocation3], 1
    %290 = vsyncpa %s289, 1
    %291 = vsyncpa [#allocation4], 1
    %s292 = scalar_lea.sflag [#allocation4], 1
    %293 = vsyncpa %s292, 1

</llo_original>
